<compile_context>
chip_gen: v7x
topology: tpu7x:2x2x1
jax: 0.10.0
libtpu: 0.0.40
codegen_flags: <defaults>
</compile_context>

<pallas_src>
import jax
import jax.numpy as jnp
from jax.experimental import pallas as pl
from jax.experimental.pallas import tpu as pltpu

EPS = 1e-3  # matches nn.BatchNorm2d(nOut, eps=0.001)

_DEFAULT_TILE_BYTES = 2 * 1024 * 1024    # ~2 MiB blocks: near-roofline, v5e-safe
_DEFAULT_FUSED_BYTES = 4 * 1024 * 1024   # fused single-pass threshold (f32 bytes)
_VMEM_LIMIT_BYTES = 32 * 1024 * 1024     # safe on v5e/v6e/v7x


def _choose_tiles(n, c, hw, itemsize, target_bytes):
    """Pick (TN, T) so a (TN, C, T) block carries roughly target_bytes."""
    row_bytes = c * hw * itemsize
    if row_bytes >= target_bytes:
        tn = 1
        if hw % 128 == 0:
            cap = max(128, ((target_bytes // (c * itemsize)) // 128) * 128)
            t = min(hw, cap)
            while hw % t != 0:          # 128 divides hw -> terminates at 128
                t -= 128
        else:
            t = max(128, ((target_bytes // (c * itemsize)) // 128) * 128)
            t = min(t, ((hw + 127) // 128) * 128)   # ragged tail handled by mask
    else:
        t = hw
        tn = 1
        for d in range(1, n + 1):       # largest divisor of n within budget
            if n % d == 0 and d * row_bytes <= target_bytes:
                tn = d
    return tn, t


# --------------------------------------------------------------------------
# Fused single-pass path (whole tensor resident in VMEM)
# --------------------------------------------------------------------------
def _br_fused(x3, gamma, beta, alpha, eps):
    n, c, hw = x3.shape
    params = jnp.stack([gamma, beta, alpha], axis=0).reshape(3, c, 1)
    inv_m = 1.0 / float(n * hw)

    def kernel(x_ref, p_ref, o_ref):
        x = x_ref[...].astype(jnp.float32)                         # (N, C, HW)
        p = p_ref[...]                                             # (3, C, 1)
        s = jnp.sum(jnp.sum(x, axis=2, keepdims=True), axis=0, keepdims=True)
        mean = s * inv_m                                           # (1, C, 1)
        d = x - mean
        m2 = jnp.sum(jnp.sum(d * d, axis=2, keepdims=True), axis=0, keepdims=True)
        var = m2 * inv_m                                           # biased
        inv_std = jax.lax.rsqrt(var + eps)
        scale = p[0] * inv_std                                     # gamma/sqrt(v+e)
        shift = p[1] - mean * scale                                # beta - mean*scale
        y = x * scale + shift
        o_ref[...] = jnp.where(y >= 0, y, p[2] * y).astype(o_ref.dtype)

    return pl.pallas_call(
        kernel,
        out_shape=jax.ShapeDtypeStruct((n, c, hw), x3.dtype),
        grid=(1,),
        in_specs=[pl.BlockSpec((n, c, hw), lambda i: (0, 0, 0)),
                  pl.BlockSpec((3, c, 1), lambda i: (0, 0, 0))],
        out_specs=pl.BlockSpec((n, c, hw), lambda i: (0, 0, 0)),
        compiler_params=pltpu.CompilerParams(
            dimension_semantics=("arbitrary",),
            vmem_limit_bytes=_VMEM_LIMIT_BYTES),
    )(x3, params)


# --------------------------------------------------------------------------
# Two-pass tiled path (stats pass -> tiny JAX merge -> apply pass)
# --------------------------------------------------------------------------
def _br_two_pass(x3, gamma, beta, alpha, eps, target_bytes):
    n, c, hw = x3.shape
    itemsize = x3.dtype.itemsize
    tn, t = _choose_tiles(n, c, hw, itemsize, target_bytes)
    num_n = n // tn
    num_h = pl.cdiv(hw, t)
    needs_mask = (hw % t) != 0
    cnt_blk = float(tn * hw)

    # ---------------- Pass A: per-batch-block partial (mean, M2) --------------
    def stats_kernel(x_ref, mean_out, m2_out, mean_acc, m2_acc):
        h = pl.program_id(1)
        hf = h.astype(jnp.float32)
        x = x_ref[...].astype(jnp.float32)                         # (TN, C, T)

        if needs_mask:
            lane = jax.lax.broadcasted_iota(jnp.int32, x.shape, 2)
            valid = (h * t + lane) < hw
            xs = jnp.where(valid, x, 0.0)
        else:
            xs = x

        # valid element count of this tile (all earlier tiles are full)
        cnt = jnp.minimum(float(t), float(hw) - hf * float(t)) * float(tn)
        tile_sum = jnp.sum(jnp.sum(xs, axis=2, keepdims=True), axis=0,
                           keepdims=True)                          # (1, C, 1)
        tile_mean = tile_sum * (1.0 / cnt)
        centered = x - tile_mean
        if needs_mask:
            centered = jnp.where(valid, centered, 0.0)
        tile_m2 = jnp.sum(jnp.sum(centered * centered, axis=2, keepdims=True),
                          axis=0, keepdims=True)                   # (1, C, 1)

        @pl.when(h == 0)
        def _():
            mean_acc[...] = tile_mean
            m2_acc[...] = tile_m2

        @pl.when(h > 0)
        def _():
            # Chan parallel-variance merge (numerically stable across tiles).
            prior = hf * float(t * tn)
            new = prior + cnt
            delta = tile_mean - mean_acc[...]
            mean_acc[...] = mean_acc[...] + delta * (cnt / new)
            m2_acc[...] = (m2_acc[...] + tile_m2
                           + (delta * delta) * (prior * cnt / new))

        @pl.when(h == num_h - 1)
        def _():
            mean_out[...] = mean_acc[...]
            m2_out[...] = m2_acc[...]

    part_mean, part_m2 = pl.pallas_call(
        stats_kernel,
        out_shape=(jax.ShapeDtypeStruct((num_n, c, 1), jnp.float32),
                   jax.ShapeDtypeStruct((num_n, c, 1), jnp.float32)),
        grid=(num_n, num_h),
        in_specs=[pl.BlockSpec((tn, c, t), lambda nb, hb: (nb, 0, hb))],
        out_specs=(pl.BlockSpec((1, c, 1), lambda nb, hb: (nb, 0, 0)),
                   pl.BlockSpec((1, c, 1), lambda nb, hb: (nb, 0, 0))),
        scratch_shapes=[pltpu.VMEM((1, c, 1), jnp.float32),
                        pltpu.VMEM((1, c, 1), jnp.float32)],
        compiler_params=pltpu.CompilerParams(
            dimension_semantics=("parallel", "arbitrary"),
            vmem_limit_bytes=_VMEM_LIMIT_BYTES),
    )(x3)

    # ---- tiny O(num_n * C) cross-block merge + gamma/beta fold (plain JAX) ----
    mean_nb = part_mean[:, :, 0]                                   # (num_n, C)
    m2_nb = part_m2[:, :, 0]
    grand_mean = jnp.mean(mean_nb, axis=0)                         # equal counts
    m2_tot = (jnp.sum(m2_nb, axis=0)
              + cnt_blk * jnp.sum((mean_nb - grand_mean) ** 2, axis=0))
    var = m2_tot / float(n * hw)                                   # biased
    inv_std = jax.lax.rsqrt(var + eps)
    scale = gamma * inv_std
    shift = beta - grand_mean * scale
    params = jnp.stack([scale, shift, alpha], axis=0).reshape(3, c, 1)

    # ---------------- Pass B: fused normalize (x*scale+shift) + PReLU ---------
    def apply_kernel(x_ref, p_ref, o_ref):
        x = x_ref[...].astype(jnp.float32)                         # (TN, C, T)
        p = p_ref[...]                                             # (3, C, 1)
        y = x * p[0] + p[1]
        o_ref[...] = jnp.where(y >= 0, y, p[2] * y).astype(o_ref.dtype)

    out3 = pl.pallas_call(
        apply_kernel,
        out_shape=jax.ShapeDtypeStruct((n, c, hw), x3.dtype),
        grid=(num_n, num_h),
        in_specs=[pl.BlockSpec((tn, c, t), lambda nb, hb: (nb, 0, hb)),
                  pl.BlockSpec((3, c, 1), lambda nb, hb: (0, 0, 0))],
        out_specs=pl.BlockSpec((tn, c, t), lambda nb, hb: (nb, 0, hb)),
        compiler_params=pltpu.CompilerParams(
            dimension_semantics=("parallel", "parallel"),
            vmem_limit_bytes=_VMEM_LIMIT_BYTES),
    )(x3, params)
    return out3


# --------------------------------------------------------------------------
# Public wrapper + reference
# --------------------------------------------------------------------------
def br_forward(x_nchw, gamma, beta, alpha, eps: float = EPS,
               tile_target_bytes: int = _DEFAULT_TILE_BYTES,
               fused_max_bytes: int = _DEFAULT_FUSED_BYTES):
    """x_nchw: (N, C, H, W); gamma/beta/alpha: (C,). Returns (N, C, H, W)."""
    n, c, h, w = x_nchw.shape
    hw = h * w
    x3 = x_nchw.reshape(n, c, hw)            # free reshape, no transpose
    gamma = gamma.astype(jnp.float32)
    beta = beta.astype(jnp.float32)
    alpha = alpha.astype(jnp.float32)

    f32_bytes = n * c * hw * 4
    if f32_bytes <= fused_max_bytes:
        out3 = _br_fused(x3, gamma, beta, alpha, eps)
    else:
        out3 = _br_two_pass(x3, gamma, beta, alpha, eps, tile_target_bytes)
    return out3.reshape(n, c, h, w)


def br_reference(x_nchw, gamma, beta, alpha, eps: float = EPS):
    x = x_nchw.astype(jnp.float32)
    mean = jnp.mean(x, axis=(0, 2, 3), keepdims=True)
    var = jnp.mean((x - mean) ** 2, axis=(0, 2, 3), keepdims=True)   # biased
    xhat = (x - mean) * jax.lax.rsqrt(var + eps)
    g = gamma.reshape(1, -1, 1, 1).astype(jnp.float32)
    b = beta.reshape(1, -1, 1, 1).astype(jnp.float32)
    a = alpha.reshape(1, -1, 1, 1).astype(jnp.float32)
    y = g * xhat + b
    return jnp.where(y >= 0, y, a * y).astype(x_nchw.dtype)


if __name__ == "__main__":
    key = jax.random.PRNGKey(0)

    def make_params(c):
        gamma = 1.0 + 0.1 * jnp.arange(c, dtype=jnp.float32)
        beta = 0.05 * jnp.arange(c, dtype=jnp.float32)
        alpha = 0.25 + 0.01 * jnp.arange(c, dtype=jnp.float32)
        return gamma, beta, alpha

    def check(x, **kw):
        c = x.shape[1]
        gamma, beta, alpha = make_params(c)
        out = jax.block_until_ready(br_forward(x, gamma, beta, alpha, **kw))
        ref = br_reference(x, gamma, beta, alpha)
        assert out.shape == x.shape
        err = float(jnp.max(jnp.abs(out.astype(jnp.float32)
                                    - ref.astype(jnp.float32))))
        assert err < 1e-4, err

    # 1) Demo shape -> fused single-pass path.
    k1, k2, k3 = jax.random.split(key, 3)
    x1 = jax.random.normal(k1, (2, 4, 16, 16), dtype=jnp.float32)
    check(x1)

    # 2) Same shape, force the two-pass tiled path (batch-blocked, no mask).
    check(x1, fused_max_bytes=0)

    # 3) Two-pass path with HW not a multiple of the tile (exercises the
    #    ragged-tail mask and the cross-block Chan merge). Small tile budget
    #    forces tiling even at this tiny shape.
    x3_in = jax.random.normal(k2, (2, 16, 20, 20), dtype=jnp.float32)
    check(x3_in, fused_max_bytes=0, tile_target_bytes=16 * 1024)

    print("KERNEL_OK")
</pallas_src>

<mosaic_0001>
module attributes {stable_mosaic.version = 11 : i64} {
  func.func @kernel(%arg0: i32, %arg1: memref<2x4x256xf32, #tpu.memory_space<vmem>>, %arg2: memref<3x4x1xf32, #tpu.memory_space<vmem>>, %arg3: memref<2x4x256xf32, #tpu.memory_space<vmem>>) attributes {dimension_semantics = [#tpu.dimension_semantics<arbitrary>], iteration_bounds = array<i64: 1>, scalar_prefetch = 0 : i64, scratch_operands = 0 : i64, tpu.core_type = #tpu.core_type<tc>, window_params = [{pipeline_mode = #tpu.pipeline_mode<synchronous>, transform_indices = @transform_0, window_bounds = array<i64: 2, 4, 256>}, {pipeline_mode = #tpu.pipeline_mode<synchronous>, transform_indices = @transform_1, window_bounds = array<i64: 3, 4, 1>}, {pipeline_mode = #tpu.pipeline_mode<synchronous>, transform_indices = @transform_2, window_bounds = array<i64: 2, 4, 256>}]} {
    %c0 = arith.constant 0 : index
    %c0_0 = arith.constant 0 : index
    %c0_1 = arith.constant 0 : index
    %0 = vector.load %arg1[%c0, %c0_0, %c0_1] : memref<2x4x256xf32, #tpu.memory_space<vmem>>, vector<2x4x256xf32>
    %c0_2 = arith.constant 0 : index
    %c0_3 = arith.constant 0 : index
    %c0_4 = arith.constant 0 : index
    %1 = vector.load %arg2[%c0_2, %c0_3, %c0_4] : memref<3x4x1xf32, #tpu.memory_space<vmem>>, vector<3x4x1xf32>
    %cst = arith.constant dense<0.000000e+00> : vector<2x4xf32>
    %2 = vector.multi_reduction <add>, %0, %cst [2] : vector<2x4x256xf32> to vector<2x4xf32>
    %3 = vector.shape_cast %2 : vector<2x4xf32> to vector<2x4x1xf32>
    %cst_5 = arith.constant dense<0.000000e+00> : vector<4x1xf32>
    %4 = vector.multi_reduction <add>, %3, %cst_5 [0] : vector<2x4x1xf32> to vector<4x1xf32>
    %5 = vector.shape_cast %4 : vector<4x1xf32> to vector<1x4x1xf32>
    %cst_6 = arith.constant 0.001953125 : f32
    %6 = vector.broadcast %cst_6 : f32 to vector<1x4x1xf32>
    %7 = arith.mulf %5, %6 : vector<1x4x1xf32>
    %8 = vector.broadcast %7 : vector<1x4x1xf32> to vector<2x4x256xf32>
    %9 = arith.subf %0, %8 : vector<2x4x256xf32>
    %10 = arith.mulf %9, %9 : vector<2x4x256xf32>
    %cst_7 = arith.constant dense<0.000000e+00> : vector<2x4xf32>
    %11 = vector.multi_reduction <add>, %10, %cst_7 [2] : vector<2x4x256xf32> to vector<2x4xf32>
    %12 = vector.shape_cast %11 : vector<2x4xf32> to vector<2x4x1xf32>
    %cst_8 = arith.constant dense<0.000000e+00> : vector<4x1xf32>
    %13 = vector.multi_reduction <add>, %12, %cst_8 [0] : vector<2x4x1xf32> to vector<4x1xf32>
    %14 = vector.shape_cast %13 : vector<4x1xf32> to vector<1x4x1xf32>
    %cst_9 = arith.constant 0.001953125 : f32
    %15 = vector.broadcast %cst_9 : f32 to vector<1x4x1xf32>
    %16 = arith.mulf %14, %15 : vector<1x4x1xf32>
    %cst_10 = arith.constant 1.000000e-03 : f32
    %17 = vector.broadcast %cst_10 : f32 to vector<1x4x1xf32>
    %18 = arith.addf %16, %17 : vector<1x4x1xf32>
    %19 = math.rsqrt %18 : vector<1x4x1xf32>
    %20 = vector.extract_strided_slice %1 {offsets = [0, 0, 0], sizes = [1, 4, 1], strides = [1, 1, 1]} : vector<3x4x1xf32> to vector<1x4x1xf32>
    %21 = vector.shape_cast %20 : vector<1x4x1xf32> to vector<4x1xf32>
    %22 = vector.shape_cast %21 : vector<4x1xf32> to vector<1x4x1xf32>
    %23 = arith.mulf %22, %19 : vector<1x4x1xf32>
    %24 = vector.extract_strided_slice %1 {offsets = [1, 0, 0], sizes = [1, 4, 1], strides = [1, 1, 1]} : vector<3x4x1xf32> to vector<1x4x1xf32>
    %25 = vector.shape_cast %24 : vector<1x4x1xf32> to vector<4x1xf32>
    %26 = arith.mulf %7, %23 : vector<1x4x1xf32>
    %27 = vector.shape_cast %25 : vector<4x1xf32> to vector<1x4x1xf32>
    %28 = arith.subf %27, %26 : vector<1x4x1xf32>
    %29 = vector.broadcast %23 : vector<1x4x1xf32> to vector<2x4x256xf32>
    %30 = arith.mulf %0, %29 : vector<2x4x256xf32>
    %31 = vector.broadcast %28 : vector<1x4x1xf32> to vector<2x4x256xf32>
    %32 = arith.addf %30, %31 : vector<2x4x256xf32>
    %cst_11 = arith.constant 0.000000e+00 : f32
    %33 = vector.broadcast %cst_11 : f32 to vector<2x4x256xf32>
    %34 = arith.cmpf oge, %32, %33 : vector<2x4x256xf32>
    %35 = vector.extract_strided_slice %1 {offsets = [2, 0, 0], sizes = [1, 4, 1], strides = [1, 1, 1]} : vector<3x4x1xf32> to vector<1x4x1xf32>
    %36 = vector.shape_cast %35 : vector<1x4x1xf32> to vector<4x1xf32>
    %37 = vector.shape_cast %36 : vector<4x1xf32> to vector<1x4x1xf32>
    %38 = vector.broadcast %37 : vector<1x4x1xf32> to vector<2x4x256xf32>
    %39 = arith.mulf %38, %32 : vector<2x4x256xf32>
    %40 = arith.select %34, %32, %39 : vector<2x4x256xi1>, vector<2x4x256xf32>
    %c0_12 = arith.constant 0 : index
    %c0_13 = arith.constant 0 : index
    %c0_14 = arith.constant 0 : index
    %41 = vector.load %arg3[%c0_12, %c0_13, %c0_14] : memref<2x4x256xf32, #tpu.memory_space<vmem>>, vector<2x4x256xf32>
    tpu.vector_store %arg3[%c0_12, %c0_13, %c0_14], %40 {strides = array<i32>} : memref<2x4x256xf32, #tpu.memory_space<vmem>>, vector<2x4x256xf32>,
    return
  }
  func.func @transform_0(%arg0: i32) -> (i32, i32, i32) {
    %c0_i32 = arith.constant 0 : i32
    %c0_i32_0 = arith.constant 0 : i32
    %c0_i32_1 = arith.constant 0 : i32
    %c0_i32_2 = arith.constant 0 : i32
    return %c0_i32, %c0_i32_0, %c0_i32_1 : i32, i32, i32
  }
  func.func @transform_1(%arg0: i32) -> (i32, i32, i32) {
    %c0_i32 = arith.constant 0 : i32
    %c0_i32_0 = arith.constant 0 : i32
    %c0_i32_1 = arith.constant 0 : i32
    %c0_i32_2 = arith.constant 0 : i32
    return %c0_i32, %c0_i32_0, %c0_i32_1 : i32, i32, i32
  }
  func.func @transform_2(%arg0: i32) -> (i32, i32, i32) {
    %c0_i32 = arith.constant 0 : i32
    %c0_i32_0 = arith.constant 0 : i32
    %c0_i32_1 = arith.constant 0 : i32
    %c0_i32_2 = arith.constant 0 : i32
    return %c0_i32, %c0_i32_0, %c0_i32_1 : i32, i32, i32
  }
}

</mosaic_0001>

<llo_original>
// kernel: tpu_custom_call.1
$region0: #{tpu_custom_call.1}
  #allocation0 [shape = 'u32[]', space=smem, size = 0x4, offset = 0x4, fixed_abs, tag = 'smem constant byte address 0x4 - core index']
  #allocation1 [shape = 'u32[144,128]{1,0:T(1,128)}', space=vmem, size = 0x12000, scoped, tag = 'internal scratch']
  %s0 = inlined_call_operand.hbm [shape: f32[2,4,256], index: 0, kind: input, shape index: {}]
  %s1 = inlined_call_operand.vmem [shape: f32[3,4,1], index: 1, kind: input, shape index: {}]
  %s2 = inlined_call_operand.hbm [shape: f32[2,4,256], index: 2, kind: output, shape index: {}]
  %s3 = sld [smem:[#allocation0]]
  $region22: #{tpu_custom_call.1} parent=0
    _
  %s5 = ssub.s32 1, %s3
  %s6 = scalar_select 0, %s5, %s3
  $region1: #{tpu_custom_call.1} parent=0
    #allocation2 [shape = 'u8[8192]{0}', space=vmem, size = 0x2000, scoped, tag = 'input window, operand 0, single buffered']
    #allocation3 [shape = 's32[1]{0}', space=sflag, size = 0x4, scoped, tag = 'scoped memory for tpu_custom_call.1']
    #allocation4 [shape = 's32[1]{0}', space=sflag, size = 0x4, scoped, tag = 'scoped memory for tpu_custom_call.1']
    #allocation5 [shape = 'u8[8192]{0}', space=vmem, size = 0x2000, scoped, tag = 'output window, operand 0, single buffered']
    %7 = vsyncpa [#allocation3], 0
    %8 = vsyncpa [#allocation4], 0
    // Predicated region
    $region2: #{tpu_custom_call.1} parent=1 // pred_check
      _
    $region3: #{tpu_custom_call.1} parent=1 // pred_check_branch
      %10 = sbr.rel (0) target = $region5
    $region4: #{tpu_custom_call.1} parent=1 // pred_region
      %s12 = ssub.s32 256, 256
      %13 = vsyncadd [#allocation3], %s12
      %s14 = sshll.u32 [#allocation2], 4
      %s15 = int_to_ptr.vmem [resolvable:$true] %s14
      %20 = dma.hbm_to_vmem [thread:$0]  %s0, 256, %s15, [#allocation3], 128, 128, 8
    $region5: #{tpu_custom_call.1} parent=1 // pred_fallthru
      _
    // Predicated region
    $region6: #{tpu_custom_call.1} parent=1 // pred_check
      _
    $region7: #{tpu_custom_call.1} parent=1 // pred_check_branch
      %22 = sbr.rel (0) target = $region9
    $region8: #{tpu_custom_call.1} parent=1 // pred_region
      _
    $region9: #{tpu_custom_call.1} parent=1 // pred_fallthru
      _
    // Predicated region
    $region10: #{tpu_custom_call.1} parent=1 // pred_check
      _
    $region11: #{tpu_custom_call.1} parent=1 // pred_check_branch
      %24 = sbr.rel (0) target = $region13
    $region12: #{tpu_custom_call.1} parent=1 // pred_region
      %25 = dma.done [#allocation3], 256
    $region13: #{tpu_custom_call.1} parent=1 // pred_fallthru
      _
    %v26 = vld [vmem:[#allocation2] sm:$0xff]
    %v27 = vld [vmem:[#allocation2 + $0x8] sm:$0xff]
    %v28 = vld [vmem:[%s1] sm:$0xf]
    %v29 = vld [vmem:[%s1 + $0x4] sm:$0xf]
    %v30 = vld [vmem:[%s1 + $0x8] sm:$0xf]
    %v33 = vcombine.high %v26, %v26
    %v34 = vcombine.high %v27, %v27
    %vm37 = vcmask 1043456
    %v38 = vsel %vm37, %v26, 0.0
    %v39 = vsel %vm37, %v33, 0.0
    %v40 = vadd.f32 %v38, %v39
    %41 = vadd.xlane.f32.xlu0 %v40
    %v42 = vpop.xlane.xlu0 %41
    %v43 = vsel %vm37, %v27, 0.0
    %v44 = vsel %vm37, %v34, 0.0
    %v45 = vadd.f32 %v43, %v44
    %46 = vadd.xlane.f32.xlu0 %v45
    %v47 = vpop.xlane.xlu0 %46
    %v48 = vsel %vm37, %v42, 0.0
    %v49 = vsel %vm37, %v47, 0.0
    %v50 = vadd.f32 %v48, %v49
    %v51 = vmul.f32 %v50, 0.001953125
    %v54 = vunpack.c.l.s4 839922192
    %v55 = vunpack.c.0.s8 %v54
    %v56 = vlaneseq
    %v57 = vshrl.u32 %v56, 7
    %v58 = vsub.s32 %v55, %v57
    %v59 = vrot.slane %v51, %v58
    %v61 = vsub.f32 %v26, %v59
    %v62 = vsub.f32 %v27, %v59
    %v63 = vmul.f32 %v61, %v61
    %v64 = vmul.f32 %v62, %v62
    %v67 = vcombine.high %v63, %v63
    %v68 = vcombine.high %v64, %v64
    %v71 = vsel %vm37, %v63, 0.0
    %v72 = vsel %vm37, %v67, 0.0
    %v73 = vadd.f32 %v71, %v72
    %74 = vadd.xlane.f32.xlu0 %v73
    %v75 = vpop.xlane.xlu0 %74
    %v76 = vsel %vm37, %v64, 0.0
    %v77 = vsel %vm37, %v68, 0.0
    %v78 = vadd.f32 %v76, %v77
    %79 = vadd.xlane.f32.xlu0 %v78
    %v80 = vpop.xlane.xlu0 %79
    %v81 = vsel %vm37, %v75, 0.0
    %v82 = vsel %vm37, %v80, 0.0
    %v83 = vadd.f32 %v81, %v82
    %v84 = vmul.f32 %v83, 0.001953125
    %v85 = vadd.f32 %v84, 0.001
    %v86 = vrsqrt.pop %v85
    %v87 = vmul.f32 %v28, %v86
    %v88 = vmul.f32 %v51, %v87
    %v89 = vsub.f32 %v29, %v88
    %91 = vset.pattern.permute.xlu0 0
    %92 = vperm.xlu0 %91, %v87
    %v93 = vpop.permute.xlu0 %92
    %v95 = vunpack.c.l.s4 839922192
    %v96 = vunpack.c.0.s8 %v95
    %v97 = vlaneseq
    %v98 = vshrl.u32 %v97, 7
    %v99 = vsub.s32 %v96, %v98
    %v100 = vrot.slane %v93, %v99
    %v102 = vmul.f32 %v26, %v100
    %v103 = vmul.f32 %v27, %v100
    %105 = vset.pattern.permute.xlu0 0
    %106 = vperm.xlu0 %105, %v89
    %v107 = vpop.permute.xlu0 %106
    %v109 = vunpack.c.l.s4 839922192
    %v110 = vunpack.c.0.s8 %v109
    %v111 = vlaneseq
    %v112 = vshrl.u32 %v111, 7
    %v113 = vsub.s32 %v110, %v112
    %v114 = vrot.slane %v107, %v113
    %v116 = vadd.f32 %v102, %v114
    %v117 = vadd.f32 %v103, %v114
    %vm118 = vcmp.ge.f32.partialorder %v116, 0.0
    %vm119 = vcmp.ge.f32.partialorder %v117, 0.0
    %121 = vset.pattern.permute.xlu0 0
    %122 = vperm.xlu0 %121, %v30
    %v123 = vpop.permute.xlu0 %122
    %v127 = vcombine.high %v116, %v116
    %v128 = vcombine.high %v117, %v117
    %v131 = vmul.f32 %v123, %v116
    %v132 = vmul.f32 %v123, %v127
    %v133 = vmul.f32 %v123, %v117
    %v134 = vmul.f32 %v123, %v128
    %v139 = vcombine.low %v131, %v132
    %v140 = vcombine.low %v133, %v134
    %v143 = vsel %vm118, %v116, %v139
    %v144 = vsel %vm119, %v117, %v140
    %145 = vst [vmem:[#allocation5] sm:$0xff] %v143
    %146 = vst [vmem:[#allocation5 + $0x8] sm:$0xff] %v144
    // Predicated region
    $region14: #{tpu_custom_call.1} parent=1 // pred_check
      _
    $region15: #{tpu_custom_call.1} parent=1 // pred_check_branch
      %148 = sbr.rel (0) target = $region17
    $region16: #{tpu_custom_call.1} parent=1 // pred_region
      %s150 = ssub.s32 256, 256
      %151 = vsyncadd [#allocation4], %s150
      %s152 = sshll.u32 [#allocation5], 4
      %s153 = int_to_ptr.vmem [resolvable:$true] %s152
      %158 = dma.vmem_to_hbm [thread:$0]  %s153, 256, %s2, [#allocation4], 128, 128, 8
    $region17: #{tpu_custom_call.1} parent=1 // pred_fallthru
      _
    // Predicated region
    $region18: #{tpu_custom_call.1} parent=1 // pred_check
      _
    $region19: #{tpu_custom_call.1} parent=1 // pred_check_branch
      %160 = sbr.rel (0) target = $region21
    $region20: #{tpu_custom_call.1} parent=1 // pred_region
      %161 = dma.done [#allocation4], 256
    $region21: #{tpu_custom_call.1} parent=1 // pred_fallthru
      _
    %162 = vsyncpa [#allocation3], 1
    %163 = vsyncpa [#allocation4], 1

</llo_original>
